<compile_context>
chip_gen: v6e
topology: v6e:2x2x1
jax: 0.10.0
libtpu: 0.0.40
codegen_flags: <defaults>
</compile_context>

<pallas_src>
import math

import jax
import jax.numpy as jnp
from jax.experimental import pallas as pl
from jax.experimental.pallas import tpu as pltpu

_NEG_SLOPE = 0.2


def _mapping_proxy_kernel(x_ref, mean_ref, std_ref, o_ref):
    # VPU elementwise stream; stats block is either (1, tw) (sublane broadcast)
    # or (tb, tw) (pre-tiled small-batch path) -- both plain jnp broadcasts.
    x = x_ref[...]
    y = std_ref[...] * x + mean_ref[...]
    o_ref[...] = jnp.maximum(y, _NEG_SLOPE * y).astype(o_ref.dtype)


# --------------------------- tiling helpers ---------------------------------


def _round_up(x, m):
    return ((x + m - 1) // m) * m


def _lcm(a, b):
    return a * b // math.gcd(a, b)


def _sublane_min(dtype):
    # f32 -> 8 rows, bf16 -> 16, int8/fp8 -> 32 (sub-32-bit packs along sublanes).
    return max(8, 32 // jnp.dtype(dtype).itemsize)


def _vmem_capacity_bytes():
    """Physical per-core VMEM; fall back to the v7x floor (64 MiB)."""
    try:
        info = pltpu.get_tpu_info()
        cap = getattr(info, "vmem_capacity_bytes", None)
        if cap:
            return int(cap)
    except Exception:
        pass
    return 64 << 20


def _prefer_divisor(tile, total, quantum):
    """Shrink `tile` (by `quantum` steps, at most 2x) so it divides `total`,
    avoiding a masked partial block on the final grid step."""
    if tile >= total or total % tile == 0:
        return tile
    t = (tile // quantum) * quantum
    lo = max(quantum, tile // 2)
    while t >= lo:
        if total % t == 0:
            return t
        t -= quantum
    return tile


def _choose_fold(B, F, sublane_min):
    """Fold factor g: stream x as (B*g, F//g) so tiny batches still fill the
    vreg sublanes while the lane axis stays a multiple of 128."""
    if B >= sublane_min:
        return 1
    best_g = 1
    best_score = (min(B, sublane_min), 1 if F % 128 == 0 else 0, F)
    for g in range(2, sublane_min + 1):
        if F % g == 0 and (F // g) % 128 == 0:
            score = (min(B * g, sublane_min), 1, F // g)
            if score > best_score:
                best_g, best_score = g, score
    return best_g


def _choose_tiles(R, W, itemsize, sublane_min, g, target_bytes):
    """Pick (row_tile, lane_tile) for the (R, W) slab."""
    q = _lcm(sublane_min, g)          # row quantum: sublane- and stats-aligned
    min_rows = min(R, q)

    # Lane (feature) tile: full width unless even a minimal-row slab would blow
    # the VMEM budget (guards v7x's 64 MiB VMEM for very wide F).
    if W <= 128 or W % 128 != 0 or min_rows * W * itemsize <= target_bytes:
        tw = W
    else:
        tw = max(128, (target_bytes // (min_rows * itemsize)) // 128 * 128)
        tw = _prefer_divisor(min(tw, W), W, 128)

    # Row (batch) tile: ~target_bytes slabs, quantised, preferring even division.
    if R <= q:
        tb = R
    else:
        tb = max(q, (target_bytes // (tw * itemsize)) // q * q)
        tb = R if tb >= R else _prefer_divisor(tb, R, q)

    # Keep >=2 grid steps when the shape allows it so both of v7x's TensorCores
    # get work (both grid axes are marked "parallel").
    if pl.cdiv(R, tb) * pl.cdiv(W, tw) < 2:
        if R >= 2 * q:
            tb = min(R, _round_up(pl.cdiv(R, 2), q))
        elif W % 128 == 0 and W >= 2 * 128:
            tw = _round_up(pl.cdiv(W, 2), 128)
    return tb, tw


def _x_block_spec(shape, index_map, deep_pipeline):
    if deep_pipeline and hasattr(pl, "Buffered"):
        try:
            return pl.BlockSpec(shape, index_map, pipeline_mode=pl.Buffered(3))
        except TypeError:
            pass  # older jax without pipeline_mode: default double buffering
    return pl.BlockSpec(shape, index_map)


# ------------------------------ wrapper --------------------------------------


def mapping_proxy(x, mean, std):
    """x: (B, N, D); mean, std: (N, D). Returns LeakyReLU_0.2(std * x + mean)."""
    B, N, D = x.shape
    assert mean.shape == (N, D) and std.shape == (N, D)
    dtype = x.dtype
    mean = mean.astype(dtype)
    std = std.astype(dtype)
    itemsize = jnp.dtype(dtype).itemsize
    sublane_min = _sublane_min(dtype)
    F = N * D

    # VMEM-capacity-aware slab target + explicit scoped-VMEM limit.
    vmem_cap = _vmem_capacity_bytes()
    scoped_cap = max(32 << 20, vmem_cap - (16 << 20))          # compiler headroom
    target_block_bytes = min(8 << 20, max(1 << 20, (scoped_cap - (4 << 20)) // 5))

    # Small-batch sublane fold: x is a row-major reinterpretation of (B, F).
    g = _choose_fold(B, F, sublane_min)
    R, W = B * g, F // g
    x2 = x.reshape(R, W)

    tb, tw = _choose_tiles(R, W, itemsize, sublane_min, g, target_block_bytes)
    grid_r, grid_l = pl.cdiv(R, tb), pl.cdiv(W, tw)

    if g == 1:
        stats_rows = 1                                # sublane broadcast in-kernel
        mean2 = mean.reshape(1, W)
        std2 = std.reshape(1, W)
    else:
        # Tiny-batch path only: pre-tile the (g, W) stats to one block of rows so
        # the kernel is a plain same-shape stream (full sublane occupancy for
        # x/out); the extra stats bytes are <= one tiny block, fetched once.
        stats_rows = tb
        mean2 = jnp.tile(mean.reshape(g, W), (tb // g, 1))
        std2 = jnp.tile(std.reshape(g, W), (tb // g, 1))

    block_bytes = tb * tw * itemsize
    vmem_limit = int(min(
        scoped_cap,
        max(32 << 20, 5 * block_bytes + 4 * stats_rows * tw * itemsize + (4 << 20)),
    ))

    # Deepen x's pipeline on long grids (hides DMA issue latency on v7x's HBM).
    deep_pipeline = grid_r * grid_l >= 4

    out2 = pl.pallas_call(
        _mapping_proxy_kernel,
        out_shape=jax.ShapeDtypeStruct((R, W), dtype),
        grid_spec=pltpu.PrefetchScalarGridSpec(
            num_scalar_prefetch=0,
            grid=(grid_r, grid_l),                    # rows outer, lanes inner
            in_specs=[
                _x_block_spec((tb, tw), lambda i, j: (i, j), deep_pipeline),
                pl.BlockSpec((stats_rows, tw), lambda i, j: (0, j)),  # mean
                pl.BlockSpec((stats_rows, tw), lambda i, j: (0, j)),  # std
            ],
            out_specs=pl.BlockSpec((tb, tw), lambda i, j: (i, j)),
        ),
        compiler_params=pltpu.CompilerParams(
            dimension_semantics=("parallel", "parallel"),
            vmem_limit_bytes=vmem_limit,
        ),
    )(x2, mean2, std2)

    return out2.reshape(B, N, D)


def _reference(x, mean, std):
    y = std[None] * x + mean[None]
    return jnp.where(y >= 0, y, _NEG_SLOPE * y)


if __name__ == "__main__":
    key = jax.random.PRNGKey(0)
    kx, km, ks, kx2 = jax.random.split(key, 4)

    N, D = 8, 32  # num latent vectors, latent dim
    # Deterministic synthetic "gaussian_ft" statistics (in lieu of a checkpoint).
    mean = jax.random.normal(km, (N, D), dtype=jnp.float32)
    std = jnp.abs(jax.random.normal(ks, (N, D), dtype=jnp.float32)) + 0.5

    # Case 1: tiny batch (exercises the sublane-fold path).
    B = 2
    x = jax.random.normal(kx, (B, N, D), dtype=jnp.float32)
    out = jax.block_until_ready(mapping_proxy(x, mean, std))
    assert out.shape == (B, N, D)
    assert jnp.allclose(out, _reference(x, mean, std), atol=1e-6, rtol=1e-6), \
        "mismatch vs reference (small batch)"

    # Case 2: larger batch (exercises the multi-step row-tiled path).
    B2 = 16
    x2 = jax.random.normal(kx2, (B2, N, D), dtype=jnp.float32)
    out2 = jax.block_until_ready(mapping_proxy(x2, mean, std))
    assert out2.shape == (B2, N, D)
    assert jnp.allclose(out2, _reference(x2, mean, std), atol=1e-6, rtol=1e-6), \
        "mismatch vs reference (batched)"

    print("KERNEL_OK")
</pallas_src>

<mosaic_0001>
module attributes {stable_mosaic.version = 11 : i64} {
  func.func @_mapping_proxy_kernel(%arg0: i32, %arg1: i32, %arg2: memref<4x128xf32, #tpu.memory_space<vmem>>, %arg3: memref<4x128xf32, #tpu.memory_space<vmem>>, %arg4: memref<4x128xf32, #tpu.memory_space<vmem>>, %arg5: memref<4x128xf32, #tpu.memory_space<vmem>>) attributes {dimension_semantics = [#tpu.dimension_semantics<parallel>, #tpu.dimension_semantics<parallel>], iteration_bounds = array<i64: 1, 1>, scalar_prefetch = 0 : i64, scratch_operands = 0 : i64, tpu.core_type = #tpu.core_type<tc>, window_params = [{transform_indices = @transform_0, window_bounds = array<i64: 4, 128>}, {transform_indices = @transform_1, window_bounds = array<i64: 4, 128>}, {transform_indices = @transform_2, window_bounds = array<i64: 4, 128>}, {transform_indices = @transform_3, window_bounds = array<i64: 4, 128>}]} {
    %c0 = arith.constant 0 : index
    %c0_0 = arith.constant 0 : index
    %0 = vector.load %arg2[%c0, %c0_0] : memref<4x128xf32, #tpu.memory_space<vmem>>, vector<4x128xf32>
    %c0_1 = arith.constant 0 : index
    %c0_2 = arith.constant 0 : index
    %1 = vector.load %arg4[%c0_1, %c0_2] : memref<4x128xf32, #tpu.memory_space<vmem>>, vector<4x128xf32>
    %2 = arith.mulf %1, %0 : vector<4x128xf32>
    %c0_3 = arith.constant 0 : index
    %c0_4 = arith.constant 0 : index
    %3 = vector.load %arg3[%c0_3, %c0_4] : memref<4x128xf32, #tpu.memory_space<vmem>>, vector<4x128xf32>
    %4 = arith.addf %2, %3 : vector<4x128xf32>
    %cst = arith.constant 2.000000e-01 : f32
    %5 = vector.broadcast %cst : f32 to vector<4x128xf32>
    %6 = arith.mulf %5, %4 : vector<4x128xf32>
    %7 = arith.maximumf %4, %6 : vector<4x128xf32>
    %c0_5 = arith.constant 0 : index
    %c0_6 = arith.constant 0 : index
    %8 = vector.load %arg5[%c0_5, %c0_6] : memref<4x128xf32, #tpu.memory_space<vmem>>, vector<4x128xf32>
    tpu.vector_store %arg5[%c0_5, %c0_6], %7 {strides = array<i32>} : memref<4x128xf32, #tpu.memory_space<vmem>>, vector<4x128xf32>,
    return
  }
  func.func @transform_0(%arg0: i32, %arg1: i32) -> (i32, i32) {
    %c0_i32 = arith.constant 0 : i32
    return %arg0, %arg1 : i32, i32
  }
  func.func @transform_1(%arg0: i32, %arg1: i32) -> (i32, i32) {
    %c0_i32 = arith.constant 0 : i32
    %c0_i32_0 = arith.constant 0 : i32
    return %c0_i32, %arg1 : i32, i32
  }
  func.func @transform_2(%arg0: i32, %arg1: i32) -> (i32, i32) {
    %c0_i32 = arith.constant 0 : i32
    %c0_i32_0 = arith.constant 0 : i32
    return %c0_i32, %arg1 : i32, i32
  }
  func.func @transform_3(%arg0: i32, %arg1: i32) -> (i32, i32) {
    %c0_i32 = arith.constant 0 : i32
    return %arg0, %arg1 : i32, i32
  }
}

</mosaic_0001>

<llo_original>
// kernel: tpu_custom_call.1
$region0: #{tpu_custom_call.1}
  #allocation0 [shape = 'u32[]', space=smem, size = 0x4, offset = 0x4, fixed_abs, tag = 'smem constant byte address 0x4 - core index']
  #allocation1 [shape = 'u32[144,128]{1,0:T(1,128)}', space=vmem, size = 0x12000, scoped, tag = 'internal scratch']
  %s0 = inlined_call_operand.hbm [shape: f32[4,128], index: 0, kind: input, shape index: {}]
  %s1 = inlined_call_operand.hbm [shape: f32[4,128], index: 1, kind: input, shape index: {}]
  %s2 = inlined_call_operand.hbm [shape: f32[4,128], index: 2, kind: input, shape index: {}]
  %s3 = inlined_call_operand.hbm [shape: f32[4,128], index: 3, kind: output, shape index: {}]
  %s4 = sld [smem:[#allocation0]]
  $region34: #{tpu_custom_call.1} parent=0
    _
  %s6 = ssub.s32 1, %s4
  %s7 = scalar_select 0, %s6, %s4
  $region1: #{tpu_custom_call.1} parent=0
    #allocation2 [shape = 'u8[2048]{0}', space=vmem, size = 0x800, scoped, tag = 'input window, operand 0, single buffered']
    #allocation3 [shape = 's32[1]{0}', space=sflag, size = 0x4, scoped, tag = 'scoped memory for tpu_custom_call.1']
    #allocation4 [shape = 's32[1]{0}', space=sflag, size = 0x4, scoped, tag = 'scoped memory for tpu_custom_call.1']
    #allocation5 [shape = 'u8[2048]{0}', space=vmem, size = 0x800, scoped, tag = 'input window, operand 1, single buffered']
    #allocation6 [shape = 's32[1]{0}', space=sflag, size = 0x4, scoped, tag = 'scoped memory for tpu_custom_call.1']
    #allocation7 [shape = 'u8[2048]{0}', space=vmem, size = 0x800, scoped, tag = 'input window, operand 2, single buffered']
    #allocation8 [shape = 'u8[2048]{0}', space=vmem, size = 0x800, scoped, tag = 'output window, operand 0, single buffered']
    %8 = vsyncpa [#allocation3], 0
    %9 = vsyncpa [#allocation6], 0
    %10 = vsyncpa [#allocation4], 0
    // Predicated region
    $region2: #{tpu_custom_call.1} parent=1 // pred_check
      _
    $region3: #{tpu_custom_call.1} parent=1 // pred_check_branch
      %12 = sbr.rel (0) target = $region5
    $region4: #{tpu_custom_call.1} parent=1 // pred_region
      %s14 = ssub.s32 64, 64
      %15 = vsyncadd [#allocation3], %s14
      %s17 = sshll.u32 [#allocation2], 4
      %s18 = int_to_ptr.vmem [resolvable:$true] %s17
      %20 = dma.hbm_to_vmem [thread:$0]  %s0, 64, %s18, [#allocation3]
    $region5: #{tpu_custom_call.1} parent=1 // pred_fallthru
      _
    // Predicated region
    $region6: #{tpu_custom_call.1} parent=1 // pred_check
      _
    $region7: #{tpu_custom_call.1} parent=1 // pred_check_branch
      %22 = sbr.rel (0) target = $region9
    $region8: #{tpu_custom_call.1} parent=1 // pred_region
      %s24 = ssub.s32 64, 64
      %25 = vsyncadd [#allocation6], %s24
      %s27 = sshll.u32 [#allocation5], 4
      %s28 = int_to_ptr.vmem [resolvable:$true] %s27
      %30 = dma.hbm_to_vmem [thread:$0]  %s1, 64, %s28, [#allocation6]
    $region9: #{tpu_custom_call.1} parent=1 // pred_fallthru
      _
    // Predicated region
    $region10: #{tpu_custom_call.1} parent=1 // pred_check
      _
    $region11: #{tpu_custom_call.1} parent=1 // pred_check_branch
      %32 = sbr.rel (0) target = $region13
    $region12: #{tpu_custom_call.1} parent=1 // pred_region
      %s34 = ssub.s32 64, 64
      %35 = vsyncadd [#allocation6], %s34
      %s37 = sshll.u32 [#allocation7], 4
      %s38 = int_to_ptr.vmem [resolvable:$true] %s37
      %40 = dma.hbm_to_vmem [thread:$0]  %s2, 64, %s38, [#allocation6]
    $region13: #{tpu_custom_call.1} parent=1 // pred_fallthru
      _
    // Predicated region
    $region14: #{tpu_custom_call.1} parent=1 // pred_check
      _
    $region15: #{tpu_custom_call.1} parent=1 // pred_check_branch
      %42 = sbr.rel (0) target = $region17
    $region16: #{tpu_custom_call.1} parent=1 // pred_region
      %43 = dma.done [#allocation3], 64
    $region17: #{tpu_custom_call.1} parent=1 // pred_fallthru
      _
    // Predicated region
    $region18: #{tpu_custom_call.1} parent=1 // pred_check
      _
    $region19: #{tpu_custom_call.1} parent=1 // pred_check_branch
      %45 = sbr.rel (0) target = $region21
    $region20: #{tpu_custom_call.1} parent=1 // pred_region
      %46 = dma.done [#allocation6], 64
    $region21: #{tpu_custom_call.1} parent=1 // pred_fallthru
      _
    // Predicated region
    $region22: #{tpu_custom_call.1} parent=1 // pred_check
      _
    $region23: #{tpu_custom_call.1} parent=1 // pred_check_branch
      %48 = sbr.rel (0) target = $region25
    $region24: #{tpu_custom_call.1} parent=1 // pred_region
      %49 = dma.done [#allocation6], 64
    $region25: #{tpu_custom_call.1} parent=1 // pred_fallthru
      _
    %v50 = vld [vmem:[#allocation2] sm:$0xf]
    %v51 = vld [vmem:[#allocation7] sm:$0xf]
    %v52 = vmul.f32 %v51, %v50
    %v53 = vld [vmem:[#allocation5] sm:$0xf]
    %v54 = vadd.f32 %v52, %v53
    %v55 = vmul.f32 %v54, 0.2
    %v56 = vmax.f32 %v54, %v55
    %57 = vst [vmem:[#allocation8] sm:$0xf] %v56
    // Predicated region
    $region26: #{tpu_custom_call.1} parent=1 // pred_check
      _
    $region27: #{tpu_custom_call.1} parent=1 // pred_check_branch
      %59 = sbr.rel (0) target = $region29
    $region28: #{tpu_custom_call.1} parent=1 // pred_region
      %s61 = ssub.s32 64, 64
      %62 = vsyncadd [#allocation4], %s61
      %s64 = sshll.u32 [#allocation8], 4
      %s65 = int_to_ptr.vmem [resolvable:$true] %s64
      %67 = dma.vmem_to_hbm [thread:$0]  %s65, 64, %s3, [#allocation4]
    $region29: #{tpu_custom_call.1} parent=1 // pred_fallthru
      _
    // Predicated region
    $region30: #{tpu_custom_call.1} parent=1 // pred_check
      _
    $region31: #{tpu_custom_call.1} parent=1 // pred_check_branch
      %69 = sbr.rel (0) target = $region33
    $region32: #{tpu_custom_call.1} parent=1 // pred_region
      %70 = dma.done [#allocation4], 64
    $region33: #{tpu_custom_call.1} parent=1 // pred_fallthru
      _
    %71 = vsyncpa [#allocation3], 1
    %72 = vsyncpa [#allocation6], 1
    %73 = vsyncpa [#allocation4], 1

</llo_original>
